<compile_context>
chip_gen: v7x
topology: tpu7x:2x2x1
jax: 0.10.0
libtpu: 0.0.40
codegen_flags: <defaults>
</compile_context>

<pallas_src>
import functools

import jax
import jax.numpy as jnp
from jax.experimental import pallas as pl
from jax.experimental.pallas import tpu as pltpu


def add_ln_kernel(x_ref, y_ref, g_ref, b_ref, o_ref, *, eps):
    # Residual add in f32.
    s = x_ref[...].astype(jnp.float32) + y_ref[...].astype(jnp.float32)
    # LayerNorm over the last (feature) dim — per-row statistics.
    mean = jnp.mean(s, axis=-1, keepdims=True)
    centered = s - mean
    var = jnp.mean(centered * centered, axis=-1, keepdims=True)
    inv = jax.lax.rsqrt(var + eps)                      # EUP, cheap
    out = centered * inv * g_ref[...].astype(jnp.float32) \
        + b_ref[...].astype(jnp.float32)
    o_ref[...] = out.astype(o_ref.dtype)


def _pick_tile_m(M, D, *, vmem_budget_bytes):
    # 2 inputs + 1 output, double-buffered by the pipeline => ~6 (tile_m, D)
    # f32-sized tiles resident.  Cap at 512 rows, floor at one sublane group.
    per_row_bytes = max(1, D * 4 * 6)
    t = vmem_budget_bytes // per_row_bytes
    t = min(512, max(8, (t // 8) * 8))
    # Don't tile bigger than the (sublane-rounded) problem itself.
    return min(t, ((M + 7) // 8) * 8)


def add_normalization(x, sublayer_x, gamma, beta, *, eps=1e-5,
                      tile_m=None, vmem_budget_bytes=16 * 1024 * 1024):
    """x, sublayer_x: (..., embed_dim); gamma, beta: (embed_dim,)."""
    assert x.shape == sublayer_x.shape
    D = x.shape[-1]
    x2d = x.reshape(-1, D)
    y2d = sublayer_x.reshape(-1, D)
    M = x2d.shape[0]

    if tile_m is None:
        tile_m = _pick_tile_m(M, D, vmem_budget_bytes=vmem_budget_bytes)

    # Pad rows so the grid is exact; padded rows are independent under LayerNorm
    # and are sliced off afterwards.
    M_pad = ((M + tile_m - 1) // tile_m) * tile_m
    if M_pad != M:
        pad = M_pad - M
        x2d = jnp.pad(x2d, ((0, pad), (0, 0)))
        y2d = jnp.pad(y2d, ((0, pad), (0, 0)))

    g2d = gamma.reshape(1, D)
    b2d = beta.reshape(1, D)

    grid = (M_pad // tile_m,)

    itemsize = jnp.dtype(x.dtype).itemsize
    cost = pl.CostEstimate(
        flops=10 * M_pad * D,              # add, center, square, scale, affine
        transcendentals=M_pad,             # one rsqrt per row
        bytes_accessed=(3 * M_pad * D + 2 * D) * itemsize,
    )

    out2d = pl.pallas_call(
        functools.partial(add_ln_kernel, eps=eps),
        out_shape=jax.ShapeDtypeStruct((M_pad, D), x.dtype),
        grid_spec=pltpu.PrefetchScalarGridSpec(
            num_scalar_prefetch=0,
            grid=grid,
            in_specs=[
                pl.BlockSpec((tile_m, D), lambda i: (i, 0)),   # x rows
                pl.BlockSpec((tile_m, D), lambda i: (i, 0)),   # sublayer rows
                pl.BlockSpec((1, D), lambda i: (0, 0)),        # gamma
                pl.BlockSpec((1, D), lambda i: (0, 0)),        # beta
            ],
            out_specs=pl.BlockSpec((tile_m, D), lambda i: (i, 0)),
        ),
        compiler_params=pltpu.CompilerParams(
            dimension_semantics=("parallel",),       # shards across TCs on v7x
            vmem_limit_bytes=64 * 1024 * 1024,
        ),
        cost_estimate=cost,
    )(x2d, y2d, g2d, b2d)

    if M_pad != M:
        out2d = out2d[:M]
    return out2d.reshape(x.shape)


def add_normalization_ref(x, sublayer_x, gamma, beta, eps=1e-5):
    s = x + sublayer_x
    mean = jnp.mean(s, axis=-1, keepdims=True)
    var = jnp.mean((s - mean) ** 2, axis=-1, keepdims=True)
    return (s - mean) / jnp.sqrt(var + eps) * gamma + beta


if __name__ == "__main__":
    # Small shapes consistent with the module: (batch, seq, embed_dim).
    batch, seq, embed_dim = 2, 8, 128   # lane-dense embed_dim

    key = jax.random.PRNGKey(0)
    kx, ky, kg, kb = jax.random.split(key, 4)

    x = jax.random.normal(kx, (batch, seq, embed_dim), dtype=jnp.float32)
    sub = jax.random.normal(ky, (batch, seq, embed_dim), dtype=jnp.float32)
    # Non-trivial affine params (PyTorch default would be gamma=1, beta=0).
    gamma = 1.0 + 0.1 * jax.random.normal(kg, (embed_dim,), jnp.float32)
    beta = 0.1 * jax.random.normal(kb, (embed_dim,), jnp.float32)

    out = add_normalization(x, sub, gamma, beta)
    out = jax.block_until_ready(out)
    ref = add_normalization_ref(x, sub, gamma, beta)
    assert out.shape == (batch, seq, embed_dim)
    assert jnp.allclose(out, ref, atol=1e-4, rtol=1e-4)

    # Exercise the row-padding path (M = 15 not a multiple of the tile).
    x2 = jax.random.normal(kx, (3, 5, embed_dim), dtype=jnp.float32)
    s2 = jax.random.normal(ky, (3, 5, embed_dim), dtype=jnp.float32)
    out2 = jax.block_until_ready(add_normalization(x2, s2, gamma, beta))
    ref2 = add_normalization_ref(x2, s2, gamma, beta)
    assert out2.shape == (3, 5, embed_dim)
    assert jnp.allclose(out2, ref2, atol=1e-4, rtol=1e-4)

    print("KERNEL_OK")
</pallas_src>

<mosaic_0001>
module attributes {stable_mosaic.version = 11 : i64} {
  func.func @add_ln_kernel(%arg0: i32, %arg1: memref<16x128xf32, #tpu.memory_space<vmem>>, %arg2: memref<16x128xf32, #tpu.memory_space<vmem>>, %arg3: memref<1x128xf32, #tpu.memory_space<vmem>>, %arg4: memref<1x128xf32, #tpu.memory_space<vmem>>, %arg5: memref<16x128xf32, #tpu.memory_space<vmem>>) attributes {dimension_semantics = [#tpu.dimension_semantics<parallel>], iteration_bounds = array<i64: 1>, scalar_prefetch = 0 : i64, scratch_operands = 0 : i64, tpu.core_type = #tpu.core_type<tc>, window_params = [{transform_indices = @transform_0, window_bounds = array<i64: 16, 128>}, {transform_indices = @transform_1, window_bounds = array<i64: 16, 128>}, {pipeline_mode = #tpu.pipeline_mode<synchronous>, transform_indices = @transform_2, window_bounds = array<i64: 1, 128>}, {pipeline_mode = #tpu.pipeline_mode<synchronous>, transform_indices = @transform_3, window_bounds = array<i64: 1, 128>}, {transform_indices = @transform_4, window_bounds = array<i64: 16, 128>}]} {
    %c0 = arith.constant 0 : index
    %c0_0 = arith.constant 0 : index
    %0 = vector.load %arg1[%c0, %c0_0] : memref<16x128xf32, #tpu.memory_space<vmem>>, vector<16x128xf32>
    %c0_1 = arith.constant 0 : index
    %c0_2 = arith.constant 0 : index
    %1 = vector.load %arg2[%c0_1, %c0_2] : memref<16x128xf32, #tpu.memory_space<vmem>>, vector<16x128xf32>
    %2 = arith.addf %0, %1 : vector<16x128xf32>
    %cst = arith.constant dense<0.000000e+00> : vector<16xf32>
    %3 = vector.multi_reduction <add>, %2, %cst [1] : vector<16x128xf32> to vector<16xf32>
    %4 = vector.shape_cast %3 : vector<16xf32> to vector<16x1xf32>
    %cst_3 = arith.constant 1.280000e+02 : f32
    %5 = vector.broadcast %cst_3 : f32 to vector<16x1xf32>
    %6 = arith.divf %4, %5 : vector<16x1xf32>
    %7 = vector.broadcast %6 : vector<16x1xf32> to vector<16x128xf32>
    %8 = arith.subf %2, %7 : vector<16x128xf32>
    %9 = arith.mulf %8, %8 : vector<16x128xf32>
    %cst_4 = arith.constant dense<0.000000e+00> : vector<16xf32>
    %10 = vector.multi_reduction <add>, %9, %cst_4 [1] : vector<16x128xf32> to vector<16xf32>
    %11 = vector.shape_cast %10 : vector<16xf32> to vector<16x1xf32>
    %cst_5 = arith.constant 1.280000e+02 : f32
    %12 = vector.broadcast %cst_5 : f32 to vector<16x1xf32>
    %13 = arith.divf %11, %12 : vector<16x1xf32>
    %cst_6 = arith.constant 9.99999974E-6 : f32
    %14 = vector.broadcast %cst_6 : f32 to vector<16x1xf32>
    %15 = arith.addf %13, %14 : vector<16x1xf32>
    %16 = math.rsqrt %15 : vector<16x1xf32>
    %17 = vector.broadcast %16 : vector<16x1xf32> to vector<16x128xf32>
    %18 = arith.mulf %8, %17 : vector<16x128xf32>
    %c0_7 = arith.constant 0 : index
    %c0_8 = arith.constant 0 : index
    %19 = vector.load %arg3[%c0_7, %c0_8] : memref<1x128xf32, #tpu.memory_space<vmem>>, vector<1x128xf32>
    %20 = vector.broadcast %19 : vector<1x128xf32> to vector<16x128xf32>
    %21 = arith.mulf %18, %20 : vector<16x128xf32>
    %c0_9 = arith.constant 0 : index
    %c0_10 = arith.constant 0 : index
    %22 = vector.load %arg4[%c0_9, %c0_10] : memref<1x128xf32, #tpu.memory_space<vmem>>, vector<1x128xf32>
    %23 = vector.broadcast %22 : vector<1x128xf32> to vector<16x128xf32>
    %24 = arith.addf %21, %23 : vector<16x128xf32>
    %c0_11 = arith.constant 0 : index
    %c0_12 = arith.constant 0 : index
    %25 = vector.load %arg5[%c0_11, %c0_12] : memref<16x128xf32, #tpu.memory_space<vmem>>, vector<16x128xf32>
    tpu.vector_store %arg5[%c0_11, %c0_12], %24 {strides = array<i32>} : memref<16x128xf32, #tpu.memory_space<vmem>>, vector<16x128xf32>,
    return
  }
  func.func @transform_0(%arg0: i32) -> (i32, i32) {
    %c0_i32 = arith.constant 0 : i32
    %c0_i32_0 = arith.constant 0 : i32
    return %arg0, %c0_i32 : i32, i32
  }
  func.func @transform_1(%arg0: i32) -> (i32, i32) {
    %c0_i32 = arith.constant 0 : i32
    %c0_i32_0 = arith.constant 0 : i32
    return %arg0, %c0_i32 : i32, i32
  }
  func.func @transform_2(%arg0: i32) -> (i32, i32) {
    %c0_i32 = arith.constant 0 : i32
    %c0_i32_0 = arith.constant 0 : i32
    %c0_i32_1 = arith.constant 0 : i32
    return %c0_i32, %c0_i32_0 : i32, i32
  }
  func.func @transform_3(%arg0: i32) -> (i32, i32) {
    %c0_i32 = arith.constant 0 : i32
    %c0_i32_0 = arith.constant 0 : i32
    %c0_i32_1 = arith.constant 0 : i32
    return %c0_i32, %c0_i32_0 : i32, i32
  }
  func.func @transform_4(%arg0: i32) -> (i32, i32) {
    %c0_i32 = arith.constant 0 : i32
    %c0_i32_0 = arith.constant 0 : i32
    return %arg0, %c0_i32 : i32, i32
  }
}

</mosaic_0001>

<llo_original>
// kernel: tpu_custom_call.1
$region0: #{tpu_custom_call.1}
  #allocation0 [shape = 'u32[]', space=smem, size = 0x4, offset = 0x4, fixed_abs, tag = 'smem constant byte address 0x4 - core index']
  #allocation1 [shape = 'u32[144,128]{1,0:T(1,128)}', space=vmem, size = 0x12000, scoped, tag = 'internal scratch']
  %s0 = inlined_call_operand.hbm [shape: f32[16,128], index: 0, kind: input, shape index: {}]
  %s1 = inlined_call_operand.hbm [shape: f32[16,128], index: 1, kind: input, shape index: {}]
  %s2 = inlined_call_operand.hbm [shape: f32[1,128], index: 2, kind: input, shape index: {}]
  %s3 = inlined_call_operand.hbm [shape: f32[1,128], index: 3, kind: input, shape index: {}]
  %s4 = inlined_call_operand.hbm [shape: f32[16,128], index: 4, kind: output, shape index: {}]
  %s5 = sld [smem:[#allocation0]]
  $region42: #{tpu_custom_call.1} parent=0
    _
  %s7 = ssub.s32 1, %s5
  %s8 = scalar_select 0, %s7, %s5
  $region1: #{tpu_custom_call.1} parent=0
    #allocation2 [shape = 'u8[8192]{0}', space=vmem, size = 0x2000, scoped, tag = 'input window, operand 0, single buffered']
    #allocation3 [shape = 's32[1]{0}', space=sflag, size = 0x4, scoped, tag = 'scoped memory for tpu_custom_call.1']
    #allocation4 [shape = 's32[1]{0}', space=sflag, size = 0x4, scoped, tag = 'scoped memory for tpu_custom_call.1']
    #allocation5 [shape = 'u8[8192]{0}', space=vmem, size = 0x2000, scoped, tag = 'input window, operand 1, single buffered']
    #allocation6 [shape = 's32[1]{0}', space=sflag, size = 0x4, scoped, tag = 'scoped memory for tpu_custom_call.1']
    #allocation7 [shape = 'u8[512]{0}', space=vmem, size = 0x400, scoped, tag = 'input window, operand 2, single buffered']
    #allocation8 [shape = 'u8[512]{0}', space=vmem, size = 0x400, scoped, tag = 'input window, operand 3, single buffered']
    #allocation9 [shape = 's32[1]{0}', space=sflag, size = 0x4, scoped, tag = 'scoped memory for tpu_custom_call.1']
    #allocation10 [shape = 'u8[8192]{0}', space=vmem, size = 0x2000, scoped, tag = 'output window, operand 0, single buffered']
    %9 = vsyncpa [#allocation3], 0
    %10 = vsyncpa [#allocation6], 0
    %11 = vsyncpa [#allocation9], 0
    %12 = vsyncpa [#allocation4], 0
    // Predicated region
    $region2: #{tpu_custom_call.1} parent=1 // pred_check
      _
    $region3: #{tpu_custom_call.1} parent=1 // pred_check_branch
      %14 = sbr.rel (0) target = $region5
    $region4: #{tpu_custom_call.1} parent=1 // pred_region
      %s16 = ssub.s32 256, 256
      %17 = vsyncadd [#allocation3], %s16
      %s18 = sshll.u32 [#allocation2], 4
      %s19 = int_to_ptr.vmem [resolvable:$true] %s18
      %24 = dma.hbm_to_vmem [thread:$0]  %s0, 256, %s19, [#allocation3], 128, 128, 8
    $region5: #{tpu_custom_call.1} parent=1 // pred_fallthru
      _
    // Predicated region
    $region6: #{tpu_custom_call.1} parent=1 // pred_check
      _
    $region7: #{tpu_custom_call.1} parent=1 // pred_check_branch
      %26 = sbr.rel (0) target = $region9
    $region8: #{tpu_custom_call.1} parent=1 // pred_region
      %s28 = ssub.s32 256, 256
      %29 = vsyncadd [#allocation6], %s28
      %s30 = sshll.u32 [#allocation5], 4
      %s31 = int_to_ptr.vmem [resolvable:$true] %s30
      %36 = dma.hbm_to_vmem [thread:$0]  %s1, 256, %s31, [#allocation6], 128, 128, 8
    $region9: #{tpu_custom_call.1} parent=1 // pred_fallthru
      _
    // Predicated region
    $region10: #{tpu_custom_call.1} parent=1 // pred_check
      _
    $region11: #{tpu_custom_call.1} parent=1 // pred_check_branch
      %38 = sbr.rel (0) target = $region13
    $region12: #{tpu_custom_call.1} parent=1 // pred_region
      %s40 = ssub.s32 16, 16
      %41 = vsyncadd [#allocation6], %s40
      %s43 = sshll.u32 [#allocation7], 4
      %s44 = int_to_ptr.vmem [resolvable:$true] %s43
      %46 = dma.hbm_to_vmem [thread:$0]  %s2, 16, %s44, [#allocation6]
    $region13: #{tpu_custom_call.1} parent=1 // pred_fallthru
      _
    // Predicated region
    $region14: #{tpu_custom_call.1} parent=1 // pred_check
      _
    $region15: #{tpu_custom_call.1} parent=1 // pred_check_branch
      %48 = sbr.rel (0) target = $region17
    $region16: #{tpu_custom_call.1} parent=1 // pred_region
      %s50 = ssub.s32 16, 16
      %51 = vsyncadd [#allocation9], %s50
      %s53 = sshll.u32 [#allocation8], 4
      %s54 = int_to_ptr.vmem [resolvable:$true] %s53
      %56 = dma.hbm_to_vmem [thread:$0]  %s3, 16, %s54, [#allocation9]
    $region17: #{tpu_custom_call.1} parent=1 // pred_fallthru
      _
    // Predicated region
    $region18: #{tpu_custom_call.1} parent=1 // pred_check
      _
    $region19: #{tpu_custom_call.1} parent=1 // pred_check_branch
      %58 = sbr.rel (0) target = $region21
    $region20: #{tpu_custom_call.1} parent=1 // pred_region
      %59 = dma.done [#allocation3], 256
    $region21: #{tpu_custom_call.1} parent=1 // pred_fallthru
      _
    // Predicated region
    $region22: #{tpu_custom_call.1} parent=1 // pred_check
      _
    $region23: #{tpu_custom_call.1} parent=1 // pred_check_branch
      %61 = sbr.rel (0) target = $region25
    $region24: #{tpu_custom_call.1} parent=1 // pred_region
      %62 = dma.done [#allocation6], 256
    $region25: #{tpu_custom_call.1} parent=1 // pred_fallthru
      _
    // Predicated region
    $region26: #{tpu_custom_call.1} parent=1 // pred_check
      _
    $region27: #{tpu_custom_call.1} parent=1 // pred_check_branch
      %64 = sbr.rel (0) target = $region29
    $region28: #{tpu_custom_call.1} parent=1 // pred_region
      %65 = dma.done [#allocation6], 16
    $region29: #{tpu_custom_call.1} parent=1 // pred_fallthru
      _
    // Predicated region
    $region30: #{tpu_custom_call.1} parent=1 // pred_check
      _
    $region31: #{tpu_custom_call.1} parent=1 // pred_check_branch
      %67 = sbr.rel (0) target = $region33
    $region32: #{tpu_custom_call.1} parent=1 // pred_region
      %68 = dma.done [#allocation9], 16
    $region33: #{tpu_custom_call.1} parent=1 // pred_fallthru
      _
    %v69 = vld [vmem:[#allocation2] sm:$0xff]
    %v70 = vld [vmem:[#allocation2 + $0x8] sm:$0xff]
    %v71 = vld [vmem:[#allocation5] sm:$0xff]
    %v72 = vld [vmem:[#allocation5 + $0x8] sm:$0xff]
    %v73 = vadd.f32 %v69, %v71
    %v74 = vadd.f32 %v70, %v72
    %75 = vadd.xlane.f32.xlu0 %v73
    %v76 = vpop.xlane.xlu0 %75
    %77 = vadd.xlane.f32.xlu0 %v74
    %v78 = vpop.xlane.xlu0 %77
    %v79 = vrcp.pop 128.0
    %v80 = vmul.f32 %v76, %v79
    %v81 = vmul.f32 %v78, %v79
    %v82 = vsub.f32 %v73, %v80
    %v83 = vsub.f32 %v74, %v81
    %v84 = vmul.f32 %v82, %v82
    %v85 = vmul.f32 %v83, %v83
    %86 = vadd.xlane.f32.xlu0 %v84
    %v87 = vpop.xlane.xlu0 %86
    %88 = vadd.xlane.f32.xlu0 %v85
    %v89 = vpop.xlane.xlu0 %88
    %v90 = vmul.f32 %v87, %v79
    %v91 = vmul.f32 %v89, %v79
    %v92 = vadd.f32 %v90, 1e-05
    %v93 = vadd.f32 %v91, 1e-05
    %v94 = vrsqrt.pop %v92
    %v95 = vrsqrt.pop %v93
    %v96 = vmul.f32 %v82, %v94
    %v97 = vmul.f32 %v83, %v95
    %v98 = vld [vmem:[#allocation7] sm:$0x1]
    %v100 = vlaneseq
    %v101 = vshrl.u32 %v100, 7
    %v102 = vsub.s32 0, %v101
    %v103 = vrot.slane %v98, %v102
    %v105 = vmul.f32 %v96, %v103
    %v106 = vmul.f32 %v97, %v103
    %v107 = vld [vmem:[#allocation8] sm:$0x1]
    %v109 = vlaneseq
    %v110 = vshrl.u32 %v109, 7
    %v111 = vsub.s32 0, %v110
    %v112 = vrot.slane %v107, %v111
    %v114 = vadd.f32 %v105, %v112
    %v115 = vadd.f32 %v106, %v112
    %116 = vst [vmem:[#allocation10] sm:$0xff] %v114
    %117 = vst [vmem:[#allocation10 + $0x8] sm:$0xff] %v115
    // Predicated region
    $region34: #{tpu_custom_call.1} parent=1 // pred_check
      _
    $region35: #{tpu_custom_call.1} parent=1 // pred_check_branch
      %119 = sbr.rel (0) target = $region37
    $region36: #{tpu_custom_call.1} parent=1 // pred_region
      %s121 = ssub.s32 256, 256
      %122 = vsyncadd [#allocation4], %s121
      %s123 = sshll.u32 [#allocation10], 4
      %s124 = int_to_ptr.vmem [resolvable:$true] %s123
      %129 = dma.vmem_to_hbm [thread:$0]  %s124, 256, %s4, [#allocation4], 128, 128, 8
    $region37: #{tpu_custom_call.1} parent=1 // pred_fallthru
      _
    // Predicated region
    $region38: #{tpu_custom_call.1} parent=1 // pred_check
      _
    $region39: #{tpu_custom_call.1} parent=1 // pred_check_branch
      %131 = sbr.rel (0) target = $region41
    $region40: #{tpu_custom_call.1} parent=1 // pred_region
      %132 = dma.done [#allocation4], 256
    $region41: #{tpu_custom_call.1} parent=1 // pred_fallthru
      _
    %133 = vsyncpa [#allocation3], 1
    %134 = vsyncpa [#allocation6], 1
    %135 = vsyncpa [#allocation9], 1
    %136 = vsyncpa [#allocation4], 1

</llo_original>
